<compile_context>
chip_gen: v7x
topology: tpu7x:2x2x1
jax: 0.10.0
libtpu: 0.0.40
codegen_flags: <defaults>
</compile_context>

<pallas_src>
import jax
import jax.numpy as jnp
from jax.experimental import pallas as pl
from jax.experimental.pallas import tpu as pltpu


DROPOUT_RATE = 0.1
LEAKY_SLOPE = 0.2
KEEP_SCALE = 1.0 / (1.0 - DROPOUT_RATE)
# Drop iff bits < p * 2^32  (so P(keep) = 1 - p).
_DROP_THRESHOLD = int(DROPOUT_RATE * (1 << 32))


def generator_kernel(noise_ref, rbits_ref, w1_ref, b1_ref, w2_ref, b2_ref, out_ref):
    """Fused: Linear -> LeakyReLU(0.2) -> Dropout(0.1, train mode) -> Linear."""
    # ---- Linear 1 (MXU, bf16 inputs, f32 accumulation) ----
    x = noise_ref[...].astype(jnp.bfloat16)                       # [TB, noise]
    h = jnp.dot(x, w1_ref[...], preferred_element_type=jnp.float32)
    h = h + b1_ref[...]                                           # f32 [TB, hidden]

    # ---- LeakyReLU(0.2) (VPU, f32) ----
    h = jnp.where(h > 0, h, LEAKY_SLOPE * h)

    # ---- Dropout(0.1), inverted (PyTorch train-mode semantics).
    #      Integer threshold compare; 1/(1-p) scale folded into the select. ----
    keep = rbits_ref[...] >= jnp.uint32(_DROP_THRESHOLD)
    h = jnp.where(keep, h * KEEP_SCALE, 0.0)

    # ---- Linear 2 (MXU) ----
    out = jnp.dot(h.astype(jnp.bfloat16), w2_ref[...],
                  preferred_element_type=jnp.float32)
    out_ref[...] = (out + b2_ref[...]).astype(out_ref.dtype)


def _choose_tile_b(batch):
    # 256 fills the v6e/v7x MXU; small batches run single-shot.
    return 256 if batch >= 256 else batch


def generator_forward(noise, params, dropout_key):
    """noise: [B, noise_size] float32. Returns [B, output_size] float32.

    Dropout is applied in "train" mode with randomness derived from
    `dropout_key` (deterministic per key; PyTorch draws fresh per call).
    """
    w1, b1, w2, b2 = params
    B, noise_size = noise.shape
    hidden = w1.shape[1]
    out_size = w2.shape[1]

    # Dropout bits generated outside the kernel (pltpu PRNG is not available
    # in the interpret/CPU lowering path).
    rbits = jax.random.bits(dropout_key, (B, hidden), dtype=jnp.uint32)

    tile_b = _choose_tile_b(B)
    padded_b = pl.cdiv(B, tile_b) * tile_b
    if padded_b != B:
        pad = padded_b - B
        noise = jnp.pad(noise, ((0, pad), (0, 0)))
        rbits = jnp.pad(rbits, ((0, pad), (0, 0)))
    grid = (padded_b // tile_b,)

    out = pl.pallas_call(
        generator_kernel,
        out_shape=jax.ShapeDtypeStruct((padded_b, out_size), jnp.float32),
        grid=grid,
        in_specs=[
            pl.BlockSpec((tile_b, noise_size), lambda i: (i, 0)),   # noise tile
            pl.BlockSpec((tile_b, hidden), lambda i: (i, 0)),       # dropout bits tile
            pl.BlockSpec((noise_size, hidden), lambda i: (0, 0)),   # w1 (resident)
            pl.BlockSpec((1, hidden), lambda i: (0, 0)),            # b1 (resident)
            pl.BlockSpec((hidden, out_size), lambda i: (0, 0)),     # w2 (resident)
            pl.BlockSpec((1, out_size), lambda i: (0, 0)),          # b2 (resident)
        ],
        out_specs=pl.BlockSpec((tile_b, out_size), lambda i: (i, 0)),
        compiler_params=pltpu.CompilerParams(
            dimension_semantics=("parallel",)),                     # megacore on v7x
    )(noise, rbits, w1, b1, w2, b2)

    return out[:B]


def init_generator_params(key, noise_size, hidden_size, output_size):
    """PyTorch nn.Linear-style init: U(-1/sqrt(fan_in), 1/sqrt(fan_in)).

    Weights stored [in, out] (transposed vs. PyTorch) in bf16 for the MXU;
    biases stay f32.
    """
    k1, k2, k3, k4 = jax.random.split(key, 4)
    bound1 = 1.0 / float(noise_size) ** 0.5
    bound2 = 1.0 / float(hidden_size) ** 0.5
    w1 = jax.random.uniform(k1, (noise_size, hidden_size), jnp.float32,
                            -bound1, bound1).astype(jnp.bfloat16)
    b1 = jax.random.uniform(k2, (1, hidden_size), jnp.float32, -bound1, bound1)
    w2 = jax.random.uniform(k3, (hidden_size, output_size), jnp.float32,
                            -bound2, bound2).astype(jnp.bfloat16)
    b2 = jax.random.uniform(k4, (1, output_size), jnp.float32, -bound2, bound2)
    return (w1, b1, w2, b2)


def generator_reference(noise, rbits, params):
    """Pure-JAX reference with identical numerics (bf16 dots, same mask)."""
    w1, b1, w2, b2 = params
    h = jnp.dot(noise.astype(jnp.bfloat16), w1,
                preferred_element_type=jnp.float32) + b1
    h = jnp.where(h > 0, h, LEAKY_SLOPE * h)
    h = jnp.where(rbits >= jnp.uint32(_DROP_THRESHOLD), h * KEEP_SCALE, 0.0)
    return jnp.dot(h.astype(jnp.bfloat16), w2,
                   preferred_element_type=jnp.float32) + b2


if __name__ == "__main__":
    # Small, lane-dense shapes consistent with the module (scaled down from
    # noise=100, hidden=768, out=768).
    B, NOISE, HIDDEN, OUT = 8, 128, 128, 128

    key = jax.random.PRNGKey(0)
    k_noise, k_params, k_drop = jax.random.split(key, 3)

    noise = jax.random.normal(k_noise, (B, NOISE), dtype=jnp.float32)
    params = init_generator_params(k_params, NOISE, HIDDEN, OUT)

    out = generator_forward(noise, params, k_drop)
    out = jax.block_until_ready(out)

    assert out.shape == (B, OUT) and out.dtype == jnp.float32

    # Check against a pure-JAX reference using the same dropout bits.
    rbits = jax.random.bits(k_drop, (B, HIDDEN), dtype=jnp.uint32)
    ref = generator_reference(noise, rbits, params)
    assert jnp.allclose(out, ref, atol=2e-2, rtol=2e-2), float(
        jnp.max(jnp.abs(out - ref)))

    print("KERNEL_OK")
</pallas_src>

<mosaic_0001>
module attributes {stable_mosaic.version = 11 : i64} {
  func.func @generator_kernel(%arg0: i32, %arg1: memref<8x128xf32, #tpu.memory_space<vmem>>, %arg2: memref<8x128xi32, #tpu.memory_space<vmem>>, %arg3: memref<128x128xbf16, #tpu.memory_space<vmem>>, %arg4: memref<1x128xf32, #tpu.memory_space<vmem>>, %arg5: memref<128x128xbf16, #tpu.memory_space<vmem>>, %arg6: memref<1x128xf32, #tpu.memory_space<vmem>>, %arg7: memref<8x128xf32, #tpu.memory_space<vmem>>) attributes {dimension_semantics = [#tpu.dimension_semantics<parallel>], iteration_bounds = array<i64: 1>, scalar_prefetch = 0 : i64, scratch_operands = 0 : i64, tpu.core_type = #tpu.core_type<tc>, window_params = [{transform_indices = @transform_0, window_bounds = array<i64: 8, 128>}, {transform_indices = @transform_1, window_bounds = array<i64: 8, 128>}, {pipeline_mode = #tpu.pipeline_mode<synchronous>, transform_indices = @transform_2, window_bounds = array<i64: 128, 128>}, {pipeline_mode = #tpu.pipeline_mode<synchronous>, transform_indices = @transform_3, window_bounds = array<i64: 1, 128>}, {pipeline_mode = #tpu.pipeline_mode<synchronous>, transform_indices = @transform_4, window_bounds = array<i64: 128, 128>}, {pipeline_mode = #tpu.pipeline_mode<synchronous>, transform_indices = @transform_5, window_bounds = array<i64: 1, 128>}, {transform_indices = @transform_6, window_bounds = array<i64: 8, 128>}]} {
    %c0 = arith.constant 0 : index
    %c0_0 = arith.constant 0 : index
    %0 = vector.load %arg1[%c0, %c0_0] : memref<8x128xf32, #tpu.memory_space<vmem>>, vector<8x128xf32>
    %1 = arith.truncf %0 : vector<8x128xf32> to vector<8x128xbf16>
    %c0_1 = arith.constant 0 : index
    %c0_2 = arith.constant 0 : index
    %2 = vector.load %arg3[%c0_1, %c0_2] : memref<128x128xbf16, #tpu.memory_space<vmem>>, vector<128x128xbf16>
    %cst = arith.constant dense<0.000000e+00> : vector<8x128xf32>
    %3 = tpu.matmul %1, %2, %cst {dimension_numbers = #tpu.dot_dimension_numbers<[1], [0], [0], [1], [0, 0, 1, 1], [], []>} : vector<8x128xbf16>, vector<128x128xbf16>, vector<8x128xf32> -> vector<8x128xf32>
    %c0_3 = arith.constant 0 : index
    %c0_4 = arith.constant 0 : index
    %4 = vector.load %arg4[%c0_3, %c0_4] : memref<1x128xf32, #tpu.memory_space<vmem>>, vector<1x128xf32>
    %5 = vector.broadcast %4 : vector<1x128xf32> to vector<8x128xf32>
    %6 = arith.addf %3, %5 : vector<8x128xf32>
    %cst_5 = arith.constant 0.000000e+00 : f32
    %7 = vector.broadcast %cst_5 : f32 to vector<8x128xf32>
    %8 = arith.cmpf ogt, %6, %7 : vector<8x128xf32>
    %cst_6 = arith.constant 2.000000e-01 : f32
    %9 = vector.broadcast %cst_6 : f32 to vector<8x128xf32>
    %10 = arith.mulf %9, %6 : vector<8x128xf32>
    %11 = arith.select %8, %6, %10 : vector<8x128xi1>, vector<8x128xf32>
    %c0_7 = arith.constant 0 : index
    %c0_8 = arith.constant 0 : index
    %12 = vector.load %arg2[%c0_7, %c0_8] : memref<8x128xi32, #tpu.memory_space<vmem>>, vector<8x128xi32>
    %c429496729_i32 = arith.constant 429496729 : i32
    %13 = vector.broadcast %c429496729_i32 : i32 to vector<8x128xi32>
    %14 = arith.cmpi uge, %12, %13 : vector<8x128xi32>
    %cst_9 = arith.constant 1.11111116 : f32
    %15 = vector.broadcast %cst_9 : f32 to vector<8x128xf32>
    %16 = arith.mulf %11, %15 : vector<8x128xf32>
    %cst_10 = arith.constant 0.000000e+00 : f32
    %17 = vector.broadcast %cst_10 : f32 to vector<8x128xf32>
    %18 = arith.select %14, %16, %17 : vector<8x128xi1>, vector<8x128xf32>
    %19 = arith.truncf %18 : vector<8x128xf32> to vector<8x128xbf16>
    %c0_11 = arith.constant 0 : index
    %c0_12 = arith.constant 0 : index
    %20 = vector.load %arg5[%c0_11, %c0_12] : memref<128x128xbf16, #tpu.memory_space<vmem>>, vector<128x128xbf16>
    %cst_13 = arith.constant dense<0.000000e+00> : vector<8x128xf32>
    %21 = tpu.matmul %19, %20, %cst_13 {dimension_numbers = #tpu.dot_dimension_numbers<[1], [0], [0], [1], [0, 0, 1, 1], [], []>} : vector<8x128xbf16>, vector<128x128xbf16>, vector<8x128xf32> -> vector<8x128xf32>
    %c0_14 = arith.constant 0 : index
    %c0_15 = arith.constant 0 : index
    %22 = vector.load %arg6[%c0_14, %c0_15] : memref<1x128xf32, #tpu.memory_space<vmem>>, vector<1x128xf32>
    %23 = vector.broadcast %22 : vector<1x128xf32> to vector<8x128xf32>
    %24 = arith.addf %21, %23 : vector<8x128xf32>
    %c0_16 = arith.constant 0 : index
    %c0_17 = arith.constant 0 : index
    %25 = vector.load %arg7[%c0_16, %c0_17] : memref<8x128xf32, #tpu.memory_space<vmem>>, vector<8x128xf32>
    tpu.vector_store %arg7[%c0_16, %c0_17], %24 {strides = array<i32>} : memref<8x128xf32, #tpu.memory_space<vmem>>, vector<8x128xf32>,
    return
  }
  func.func @transform_0(%arg0: i32) -> (i32, i32) {
    %c0_i32 = arith.constant 0 : i32
    %c0_i32_0 = arith.constant 0 : i32
    return %arg0, %c0_i32 : i32, i32
  }
  func.func @transform_1(%arg0: i32) -> (i32, i32) {
    %c0_i32 = arith.constant 0 : i32
    %c0_i32_0 = arith.constant 0 : i32
    return %arg0, %c0_i32 : i32, i32
  }
  func.func @transform_2(%arg0: i32) -> (i32, i32) {
    %c0_i32 = arith.constant 0 : i32
    %c0_i32_0 = arith.constant 0 : i32
    %c0_i32_1 = arith.constant 0 : i32
    return %c0_i32, %c0_i32_0 : i32, i32
  }
  func.func @transform_3(%arg0: i32) -> (i32, i32) {
    %c0_i32 = arith.constant 0 : i32
    %c0_i32_0 = arith.constant 0 : i32
    %c0_i32_1 = arith.constant 0 : i32
    return %c0_i32, %c0_i32_0 : i32, i32
  }
  func.func @transform_4(%arg0: i32) -> (i32, i32) {
    %c0_i32 = arith.constant 0 : i32
    %c0_i32_0 = arith.constant 0 : i32
    %c0_i32_1 = arith.constant 0 : i32
    return %c0_i32, %c0_i32_0 : i32, i32
  }
  func.func @transform_5(%arg0: i32) -> (i32, i32) {
    %c0_i32 = arith.constant 0 : i32
    %c0_i32_0 = arith.constant 0 : i32
    %c0_i32_1 = arith.constant 0 : i32
    return %c0_i32, %c0_i32_0 : i32, i32
  }
  func.func @transform_6(%arg0: i32) -> (i32, i32) {
    %c0_i32 = arith.constant 0 : i32
    %c0_i32_0 = arith.constant 0 : i32
    return %arg0, %c0_i32 : i32, i32
  }
}

</mosaic_0001>

<llo_original>
// kernel: tpu_custom_call.1
$region0: #{tpu_custom_call.1}
  #allocation0 [shape = 'u32[]', space=smem, size = 0x4, offset = 0x4, fixed_abs, tag = 'smem constant byte address 0x4 - core index']
  #allocation1 [shape = 'u32[144,128]{1,0:T(1,128)}', space=vmem, size = 0x12000, scoped, tag = 'internal scratch']
  %s0 = inlined_call_operand.hbm [shape: f32[8,128], index: 0, kind: input, shape index: {}]
  %s1 = inlined_call_operand.hbm [shape: u32[8,128], index: 1, kind: input, shape index: {}]
  %s2 = inlined_call_operand.hbm [shape: bf16[128,128], index: 2, kind: input, shape index: {}]
  %s3 = inlined_call_operand.vmem [shape: f32[1,128], index: 3, kind: input, shape index: {}]
  %s4 = inlined_call_operand.hbm [shape: bf16[128,128], index: 4, kind: input, shape index: {}]
  %s5 = inlined_call_operand.vmem [shape: f32[1,128], index: 5, kind: input, shape index: {}]
  %s6 = inlined_call_operand.hbm [shape: f32[8,128], index: 6, kind: output, shape index: {}]
  %s7 = sld [smem:[#allocation0]]
  $region50: #{tpu_custom_call.1} parent=0
    _
  %s9 = ssub.s32 1, %s7
  %s10 = scalar_select 0, %s9, %s7
  $region1: #{tpu_custom_call.1} parent=0
    #allocation2 [shape = 'u8[4096]{0}', space=vmem, size = 0x1000, scoped, tag = 'input window, operand 0, single buffered']
    #allocation3 [shape = 's32[1]{0}', space=sflag, size = 0x4, scoped, tag = 'scoped memory for tpu_custom_call.1']
    #allocation4 [shape = 's32[1]{0}', space=sflag, size = 0x4, scoped, tag = 'scoped memory for tpu_custom_call.1']
    #allocation5 [shape = 'u8[4096]{0}', space=vmem, size = 0x1000, scoped, tag = 'input window, operand 1, single buffered']
    #allocation6 [shape = 's32[1]{0}', space=sflag, size = 0x4, scoped, tag = 'scoped memory for tpu_custom_call.1']
    #allocation7 [shape = 'u8[32768]{0}', space=vmem, size = 0x8000, scoped, tag = 'input window, operand 2, single buffered']
    #allocation8 [shape = 'u8[32768]{0}', space=vmem, size = 0x8000, scoped, tag = 'input window, operand 4, single buffered']
    #allocation9 [shape = 's32[1]{0}', space=sflag, size = 0x4, scoped, tag = 'scoped memory for tpu_custom_call.1']
    #allocation10 [shape = 'u8[4096]{0}', space=vmem, size = 0x1000, scoped, tag = 'output window, operand 0, single buffered']
    %11 = vsyncpa [#allocation3], 0
    %12 = vsyncpa [#allocation6], 0
    %13 = vsyncpa [#allocation9], 0
    %14 = vsyncpa [#allocation4], 0
    // Predicated region
    $region2: #{tpu_custom_call.1} parent=1 // pred_check
      _
    $region3: #{tpu_custom_call.1} parent=1 // pred_check_branch
      %16 = sbr.rel (0) target = $region5
    $region4: #{tpu_custom_call.1} parent=1 // pred_region
      %s18 = ssub.s32 128, 128
      %19 = vsyncadd [#allocation3], %s18
      %s21 = sshll.u32 [#allocation2], 4
      %s22 = int_to_ptr.vmem [resolvable:$true] %s21
      %24 = dma.hbm_to_vmem [thread:$0]  %s0, 128, %s22, [#allocation3]
    $region5: #{tpu_custom_call.1} parent=1 // pred_fallthru
      _
    // Predicated region
    $region6: #{tpu_custom_call.1} parent=1 // pred_check
      _
    $region7: #{tpu_custom_call.1} parent=1 // pred_check_branch
      %26 = sbr.rel (0) target = $region9
    $region8: #{tpu_custom_call.1} parent=1 // pred_region
      %s28 = ssub.s32 128, 128
      %29 = vsyncadd [#allocation6], %s28
      %s31 = sshll.u32 [#allocation5], 4
      %s32 = int_to_ptr.vmem [resolvable:$true] %s31
      %34 = dma.hbm_to_vmem [thread:$0]  %s1, 128, %s32, [#allocation6]
    $region9: #{tpu_custom_call.1} parent=1 // pred_fallthru
      _
    // Predicated region
    $region10: #{tpu_custom_call.1} parent=1 // pred_check
      _
    $region11: #{tpu_custom_call.1} parent=1 // pred_check_branch
      %36 = sbr.rel (0) target = $region13
    $region12: #{tpu_custom_call.1} parent=1 // pred_region
      %s38 = ssub.s32 1024, 1024
      %39 = vsyncadd [#allocation6], %s38
      %s40 = sshll.u32 [#allocation7], 4
      %s41 = int_to_ptr.vmem [resolvable:$true] %s40
      %46 = dma.hbm_to_vmem [thread:$0]  %s2, 1024, %s41, [#allocation6], 64, 64, 4
    $region13: #{tpu_custom_call.1} parent=1 // pred_fallthru
      _
    // Predicated region
    $region14: #{tpu_custom_call.1} parent=1 // pred_check
      _
    $region15: #{tpu_custom_call.1} parent=1 // pred_check_branch
      %48 = sbr.rel (0) target = $region17
    $region16: #{tpu_custom_call.1} parent=1 // pred_region
      _
    $region17: #{tpu_custom_call.1} parent=1 // pred_fallthru
      _
    // Predicated region
    $region18: #{tpu_custom_call.1} parent=1 // pred_check
      _
    $region19: #{tpu_custom_call.1} parent=1 // pred_check_branch
      %50 = sbr.rel (0) target = $region21
    $region20: #{tpu_custom_call.1} parent=1 // pred_region
      %s52 = ssub.s32 1024, 1024
      %53 = vsyncadd [#allocation9], %s52
      %s54 = sshll.u32 [#allocation8], 4
      %s55 = int_to_ptr.vmem [resolvable:$true] %s54
      %60 = dma.hbm_to_vmem [thread:$0]  %s4, 1024, %s55, [#allocation9], 64, 64, 4
    $region21: #{tpu_custom_call.1} parent=1 // pred_fallthru
      _
    // Predicated region
    $region22: #{tpu_custom_call.1} parent=1 // pred_check
      _
    $region23: #{tpu_custom_call.1} parent=1 // pred_check_branch
      %62 = sbr.rel (0) target = $region25
    $region24: #{tpu_custom_call.1} parent=1 // pred_region
      _
    $region25: #{tpu_custom_call.1} parent=1 // pred_fallthru
      _
    // Predicated region
    $region26: #{tpu_custom_call.1} parent=1 // pred_check
      _
    $region27: #{tpu_custom_call.1} parent=1 // pred_check_branch
      %64 = sbr.rel (0) target = $region29
    $region28: #{tpu_custom_call.1} parent=1 // pred_region
      %65 = dma.done [#allocation3], 128
    $region29: #{tpu_custom_call.1} parent=1 // pred_fallthru
      _
    // Predicated region
    $region30: #{tpu_custom_call.1} parent=1 // pred_check
      _
    $region31: #{tpu_custom_call.1} parent=1 // pred_check_branch
      %67 = sbr.rel (0) target = $region33
    $region32: #{tpu_custom_call.1} parent=1 // pred_region
      %68 = dma.done [#allocation6], 128
    $region33: #{tpu_custom_call.1} parent=1 // pred_fallthru
      _
    // Predicated region
    $region34: #{tpu_custom_call.1} parent=1 // pred_check
      _
    $region35: #{tpu_custom_call.1} parent=1 // pred_check_branch
      %70 = sbr.rel (0) target = $region37
    $region36: #{tpu_custom_call.1} parent=1 // pred_region
      %71 = dma.done [#allocation6], 1024
    $region37: #{tpu_custom_call.1} parent=1 // pred_fallthru
      _
    // Predicated region
    $region38: #{tpu_custom_call.1} parent=1 // pred_check
      _
    $region39: #{tpu_custom_call.1} parent=1 // pred_check_branch
      %73 = sbr.rel (0) target = $region41
    $region40: #{tpu_custom_call.1} parent=1 // pred_region
      %74 = dma.done [#allocation9], 1024
    $region41: #{tpu_custom_call.1} parent=1 // pred_fallthru
      _
    %v76 = vld [vmem:[#allocation2] sm:$0xff]
    %v77 = vpack.c.bf16 %v76, %v76
    %v78 = vld [vmem:[#allocation7] sm:$0xf]
    %v79 = vld [vmem:[#allocation7 + $0x4] sm:$0xf]
    %v80 = vld [vmem:[#allocation7 + $0x8] sm:$0xf]
    %v81 = vld [vmem:[#allocation7 + $0xc] sm:$0xf]
    %v82 = vld [vmem:[#allocation7 + $0x10] sm:$0xf]
    %v83 = vld [vmem:[#allocation7 + $0x14] sm:$0xf]
    %v84 = vld [vmem:[#allocation7 + $0x18] sm:$0xf]
    %v85 = vld [vmem:[#allocation7 + $0x1c] sm:$0xf]
    %v86 = vld [vmem:[#allocation7 + $0x20] sm:$0xf]
    %v87 = vld [vmem:[#allocation7 + $0x24] sm:$0xf]
    %v88 = vld [vmem:[#allocation7 + $0x28] sm:$0xf]
    %v89 = vld [vmem:[#allocation7 + $0x2c] sm:$0xf]
    %v90 = vld [vmem:[#allocation7 + $0x30] sm:$0xf]
    %v91 = vld [vmem:[#allocation7 + $0x34] sm:$0xf]
    %v92 = vld [vmem:[#allocation7 + $0x38] sm:$0xf]
    %v93 = vld [vmem:[#allocation7 + $0x3c] sm:$0xf]
    %v94 = vld [vmem:[%s3] sm:$0x1]
    %v96 = vlaneseq
    %v97 = vshrl.u32 %v96, 7
    %v98 = vsub.s32 0, %v97
    %v99 = vrot.slane %v94, %v98
    %v117 = vunpack.c.l.b16 %v78
    %v118 = vunpack.c.l.b16 %v79
    %v119 = vunpack.c.l.b16 %v80
    %v120 = vunpack.c.l.b16 %v81
    %v121 = vunpack.c.l.b16 %v82
    %v122 = vunpack.c.l.b16 %v83
    %v123 = vunpack.c.l.b16 %v84
    %v124 = vunpack.c.l.b16 %v85
    %v125 = vunpack.c.l.b16 %v86
    %v126 = vunpack.c.l.b16 %v87
    %v127 = vunpack.c.l.b16 %v88
    %v128 = vunpack.c.l.b16 %v89
    %v129 = vunpack.c.l.b16 %v90
    %v130 = vunpack.c.l.b16 %v91
    %v131 = vunpack.c.l.b16 %v92
    %v132 = vunpack.c.l.b16 %v93
    %v133 = vpack.c.b16 %v118, %v117
    %v134 = vpack.c.b16 %v120, %v119
    %v135 = vpack.c.b16 %v122, %v121
    %v136 = vpack.c.b16 %v124, %v123
    %v137 = vpack.c.b16 %v126, %v125
    %v138 = vpack.c.b16 %v128, %v127
    %v139 = vpack.c.b16 %v130, %v129
    %v140 = vpack.c.b16 %v132, %v131
    %149 = vmatprep.subr.bf16.mxu0 0
    %150 = vmatpush1.bf16.msra.mxu0 %v133
    %151 = vmatprep.subr.bf16.mxu0 0
    %152 = vmatpush1.bf16.msra.mxu0 %v134
    %153 = vmatprep.subr.bf16.mxu0 0
    %154 = vmatpush1.bf16.msra.mxu0 %v135
    %155 = vmatprep.subr.bf16.mxu0 0
    %156 = vmatpush1.bf16.msra.mxu0 %v136
    %157 = vmatprep.subr.bf16.mxu0 0
    %158 = vmatpush1.bf16.msra.mxu0 %v137
    %159 = vmatprep.subr.bf16.mxu0 0
    %160 = vmatpush1.bf16.msra.mxu0 %v138
    %161 = vmatprep.subr.bf16.mxu0 0
    %162 = vmatpush1.bf16.msra.mxu0 %v139
    %163 = vmatprep.subr.bf16.mxu0 0
    %164 = vmatpush1.bf16.msra.mxu0 %v140
    %165 = vmatprep.subr.bf16.mxu0 0
    %166 = vmatpush1.bf16.msra.mxu0 0
    %167 = vmatprep.subr.bf16.mxu0 0
    %168 = vmatpush1.bf16.msra.mxu0 0
    %169 = vmatprep.subr.bf16.mxu0 0
    %170 = vmatpush1.bf16.msra.mxu0 0
    %171 = vmatprep.subr.bf16.mxu0 0
    %172 = vmatpush1.bf16.msra.mxu0 0
    %173 = vmatprep.subr.bf16.mxu0 0
    %174 = vmatpush1.bf16.msra.mxu0 0
    %175 = vmatprep.subr.bf16.mxu0 0
    %176 = vmatpush1.bf16.msra.mxu0 0
    %177 = vmatprep.subr.bf16.mxu0 0
    %178 = vmatpush1.bf16.msra.mxu0 0
    %179 = vmatprep.subr.bf16.mxu0 0
    %180 = vmatpush1.bf16.msra.mxu0 0
    %181 = vmatprep.mubr.bf16.mxu0 0
    %182 = vmatmul.mubr.bf16.gmra.mrb[0].mxu0 %v77
    %v183 = vpop.f32.mrb[0].mxu0
    %v184 = vadd.f32 %v99, %v183
    %v185 = vpop.f32.mrb[0].mxu0
    %v186 = vpop.f32.mrb[0].mxu0
    %v187 = vpop.f32.mrb[0].mxu0
    %188 = vdwg.mxu0
    %vm189 = vcmp.gt.f32.partialorder %v184, 0.0
    %v190 = vmul.f32 %v184, 0.2
    %v191 = vsel %vm189, %v184, %v190
    %v192 = vld [vmem:[#allocation5] sm:$0xff]
    %vm193 = vcmp.ge.u32.totalorder %v192, 429496729
    %v194 = vmul.f32 %v191, 1.1111112
    %v195 = vsel %vm193, %v194, 0.0
    %v196 = vpack.c.bf16 %v195, %v195
    %v197 = vld [vmem:[#allocation8] sm:$0xf]
    %v198 = vld [vmem:[#allocation8 + $0x4] sm:$0xf]
    %v199 = vld [vmem:[#allocation8 + $0x8] sm:$0xf]
    %v200 = vld [vmem:[#allocation8 + $0xc] sm:$0xf]
    %v201 = vld [vmem:[#allocation8 + $0x10] sm:$0xf]
    %v202 = vld [vmem:[#allocation8 + $0x14] sm:$0xf]
    %v203 = vld [vmem:[#allocation8 + $0x18] sm:$0xf]
    %v204 = vld [vmem:[#allocation8 + $0x1c] sm:$0xf]
    %v205 = vld [vmem:[#allocation8 + $0x20] sm:$0xf]
    %v206 = vld [vmem:[#allocation8 + $0x24] sm:$0xf]
    %v207 = vld [vmem:[#allocation8 + $0x28] sm:$0xf]
    %v208 = vld [vmem:[#allocation8 + $0x2c] sm:$0xf]
    %v209 = vld [vmem:[#allocation8 + $0x30] sm:$0xf]
    %v210 = vld [vmem:[#allocation8 + $0x34] sm:$0xf]
    %v211 = vld [vmem:[#allocation8 + $0x38] sm:$0xf]
    %v212 = vld [vmem:[#allocation8 + $0x3c] sm:$0xf]
    %v213 = vld [vmem:[%s5] sm:$0x1]
    %v215 = vlaneseq
    %v216 = vshrl.u32 %v215, 7
    %v217 = vsub.s32 0, %v216
    %v218 = vrot.slane %v213, %v217
    %v236 = vunpack.c.l.b16 %v197
    %v237 = vunpack.c.l.b16 %v198
    %v238 = vunpack.c.l.b16 %v199
    %v239 = vunpack.c.l.b16 %v200
    %v240 = vunpack.c.l.b16 %v201
    %v241 = vunpack.c.l.b16 %v202
    %v242 = vunpack.c.l.b16 %v203
    %v243 = vunpack.c.l.b16 %v204
    %v244 = vunpack.c.l.b16 %v205
    %v245 = vunpack.c.l.b16 %v206
    %v246 = vunpack.c.l.b16 %v207
    %v247 = vunpack.c.l.b16 %v208
    %v248 = vunpack.c.l.b16 %v209
    %v249 = vunpack.c.l.b16 %v210
    %v250 = vunpack.c.l.b16 %v211
    %v251 = vunpack.c.l.b16 %v212
    %v252 = vpack.c.b16 %v237, %v236
    %v253 = vpack.c.b16 %v239, %v238
    %v254 = vpack.c.b16 %v241, %v240
    %v255 = vpack.c.b16 %v243, %v242
    %v256 = vpack.c.b16 %v245, %v244
    %v257 = vpack.c.b16 %v247, %v246
    %v258 = vpack.c.b16 %v249, %v248
    %v259 = vpack.c.b16 %v251, %v250
    %268 = vmatprep.subr.bf16.mxu0 0
    %269 = vmatpush1.bf16.msra.mxu0 %v252
    %270 = vmatprep.subr.bf16.mxu0 0
    %271 = vmatpush1.bf16.msra.mxu0 %v253
    %272 = vmatprep.subr.bf16.mxu0 0
    %273 = vmatpush1.bf16.msra.mxu0 %v254
    %274 = vmatprep.subr.bf16.mxu0 0
    %275 = vmatpush1.bf16.msra.mxu0 %v255
    %276 = vmatprep.subr.bf16.mxu0 0
    %277 = vmatpush1.bf16.msra.mxu0 %v256
    %278 = vmatprep.subr.bf16.mxu0 0
    %279 = vmatpush1.bf16.msra.mxu0 %v257
    %280 = vmatprep.subr.bf16.mxu0 0
    %281 = vmatpush1.bf16.msra.mxu0 %v258
    %282 = vmatprep.subr.bf16.mxu0 0
    %283 = vmatpush1.bf16.msra.mxu0 %v259
    %284 = vmatprep.subr.bf16.mxu0 0
    %285 = vmatpush1.bf16.msra.mxu0 0
    %286 = vmatprep.subr.bf16.mxu0 0
    %287 = vmatpush1.bf16.msra.mxu0 0
    %288 = vmatprep.subr.bf16.mxu0 0
    %289 = vmatpush1.bf16.msra.mxu0 0
    %290 = vmatprep.subr.bf16.mxu0 0
    %291 = vmatpush1.bf16.msra.mxu0 0
    %292 = vmatprep.subr.bf16.mxu0 0
    %293 = vmatpush1.bf16.msra.mxu0 0
    %294 = vmatprep.subr.bf16.mxu0 0
    %295 = vmatpush1.bf16.msra.mxu0 0
    %296 = vmatprep.subr.bf16.mxu0 0
    %297 = vmatpush1.bf16.msra.mxu0 0
    %298 = vmatprep.subr.bf16.mxu0 0
    %299 = vmatpush1.bf16.msra.mxu0 0
    %300 = vmatprep.mubr.bf16.mxu0 0
    %301 = vmatmul.mubr.bf16.gmra.mrb[0].mxu0 %v196
    %v302 = vpop.f32.mrb[0].mxu0
    %v303 = vadd.f32 %v218, %v302
    %v304 = vpop.f32.mrb[0].mxu0
    %v305 = vpop.f32.mrb[0].mxu0
    %v306 = vpop.f32.mrb[0].mxu0
    %307 = vdwg.mxu0
    %308 = vst [vmem:[#allocation10] sm:$0xff] %v303
    // Predicated region
    $region42: #{tpu_custom_call.1} parent=1 // pred_check
      _
    $region43: #{tpu_custom_call.1} parent=1 // pred_check_branch
      %310 = sbr.rel (0) target = $region45
    $region44: #{tpu_custom_call.1} parent=1 // pred_region
      %s312 = ssub.s32 128, 128
      %313 = vsyncadd [#allocation4], %s312
      %s315 = sshll.u32 [#allocation10], 4
      %s316 = int_to_ptr.vmem [resolvable:$true] %s315
      %318 = dma.vmem_to_hbm [thread:$0]  %s316, 128, %s6, [#allocation4]
    $region45: #{tpu_custom_call.1} parent=1 // pred_fallthru
      _
    // Predicated region
    $region46: #{tpu_custom_call.1} parent=1 // pred_check
      _
    $region47: #{tpu_custom_call.1} parent=1 // pred_check_branch
      %320 = sbr.rel (0) target = $region49
    $region48: #{tpu_custom_call.1} parent=1 // pred_region
      %321 = dma.done [#allocation4], 128
    $region49: #{tpu_custom_call.1} parent=1 // pred_fallthru
      _
    %322 = vsyncpa [#allocation3], 1
    %323 = vsyncpa [#allocation6], 1
    %324 = vsyncpa [#allocation9], 1
    %325 = vsyncpa [#allocation4], 1

</llo_original>
